<compile_context>
chip_gen: v7x
topology: tpu7x:2x2x1
jax: 0.10.0
libtpu: 0.0.40
codegen_flags: <defaults>
</compile_context>

<pallas_src>
import jax
import jax.numpy as jnp
from jax.experimental import pallas as pl
from jax.experimental.pallas import tpu as pltpu


def _ceil_div(a, b):
    return -(-a // b)


def _round_up(a, m):
    return _ceil_div(a, m) * m


def _make_loss_kernel(B, TB, need_mask):
    """Per-tile partial-sum kernel. B, TB, need_mask are static Python values."""

    def kernel(pe_ref,    # (TB, E) pred_emo, native dtype
               emo_ref,   # (TB, E) emo target, native dtype
               pc_ref,    # (TB, C) logits, native dtype
               cou_ref,   # (TB, 1) int32 class indices
               mse_ref,   # (1, 1, 1) f32: per-tile sum of squared diffs
               ce_ref):   # (1, 1, 1) f32: per-tile sum of per-row CE
        if need_mask:
            i = pl.program_id(0)
            row_ids = i * TB + jax.lax.broadcasted_iota(jnp.int32, (TB, 1), 0)
            valid = row_ids < B                      # (TB,1) bool; masks ragged tail rows

        # ---- MSE partial ----
        d = pe_ref[...].astype(jnp.float32) - emo_ref[...].astype(jnp.float32)
        dd = d * d
        if need_mask:
            dd = jnp.where(valid, dd, 0.0)           # select: garbage NaN cannot leak
        mse_ref[...] = jnp.sum(dd, keepdims=True).reshape(1, 1, 1)

        # ---- CrossEntropy partial: sum over rows of (logsumexp - logit[target]) ----
        logits = pc_ref[...].astype(jnp.float32)
        if need_mask:
            logits = jnp.where(valid, logits, 0.0)   # mask BEFORE exp: no Inf/NaN
        m = jnp.max(logits, axis=-1, keepdims=True)
        lse = jnp.log(jnp.sum(jnp.exp(logits - m), axis=-1, keepdims=True)) + m
        cls = jax.lax.broadcasted_iota(jnp.int32, logits.shape, 1)
        # NOTE: out-of-range class indices silently yield target-logit 0 (PyTorch raises).
        tgt = jnp.sum(jnp.where(cls == cou_ref[...], logits, 0.0),
                      axis=-1, keepdims=True)
        per_row = lse - tgt                          # (TB, 1)
        if need_mask:
            per_row = jnp.where(valid, per_row, 0.0)
        ce_ref[...] = jnp.sum(per_row, keepdims=True).reshape(1, 1, 1)

    return kernel


def ori_loss_func(log_vars, pred_emo, pred_cou, pred_age, emo, cou, age,
                  *, block_b=16384):
    """Pallas implementation of Ori_loss_func.forward.

    log_vars: (3,) float. pred_emo/emo: (B, E). pred_cou: (B, C) logits.
    cou: (B,) integer class indices. pred_age/age are accepted for API parity but
    never touched: the module computes L1(pred_age, age) and discards the result.
    """
    del pred_age, age   # dead in the module's returned loss -> no DMA, no compute

    B, E = pred_emo.shape
    Bc, C = pred_cou.shape
    assert Bc == B and emo.shape == (B, E)

    # ---- batch tile: as large as safely fits the double-buffered VMEM budget ----
    row_bytes = (E * pred_emo.dtype.itemsize + E * emo.dtype.itemsize
                 + C * pred_cou.dtype.itemsize + 4)          # cou streamed as i32
    vmem_budget = 8 * 1024 * 1024   # conservative for v7x (64 MiB) & v5e scoped default
    tb_cap = max(32, (vmem_budget // (2 * row_bytes)) // 32 * 32)
    TB = min(_round_up(max(int(block_b), 32), 32), tb_cap)
    if TB >= B:
        TB = B                      # single full-extent block: no divisibility rules apply
        n_tiles = 1
    else:
        n_tiles = _ceil_div(B, TB)
    need_mask = (n_tiles * TB != B)  # ragged last tile -> mask garbage rows in-kernel

    cou2d = cou.astype(jnp.int32).reshape(B, 1)   # cast/reshape exactly once (tiny)

    kernel = _make_loss_kernel(B, TB, need_mask)

    in_bytes = (pred_emo.size * pred_emo.dtype.itemsize
                + emo.size * emo.dtype.itemsize
                + pred_cou.size * pred_cou.dtype.itemsize + B * 4)
    cost = pl.CostEstimate(flops=int(B * (3 * E + 6 * C)),
                           transcendentals=int(B * (C + 1)),
                           bytes_accessed=int(in_bytes + 2 * n_tiles * 4))

    mse_part, ce_part = pl.pallas_call(
        kernel,
        out_shape=(jax.ShapeDtypeStruct((n_tiles, 1, 1), jnp.float32),
                   jax.ShapeDtypeStruct((n_tiles, 1, 1), jnp.float32)),
        grid=(n_tiles,),
        in_specs=[
            pl.BlockSpec((TB, E), lambda i: (i, 0)),   # pred_emo
            pl.BlockSpec((TB, E), lambda i: (i, 0)),   # emo
            pl.BlockSpec((TB, C), lambda i: (i, 0)),   # logits
            pl.BlockSpec((TB, 1), lambda i: (i, 0)),   # class indices
        ],
        out_specs=(pl.BlockSpec((1, 1, 1), lambda i: (i, 0, 0)),
                   pl.BlockSpec((1, 1, 1), lambda i: (i, 0, 0))),
        compiler_params=pltpu.CompilerParams(
            dimension_semantics=("parallel",)),  # independent tiles -> v7x megacore split
        cost_estimate=cost,
    )(pred_emo, emo, pred_cou, cou2d)

    lv = log_vars.astype(jnp.float32)
    loss_emo = jnp.sum(mse_part) / float(B * E)
    loss_cou = jnp.sum(ce_part) / float(B)
    return (lv[0] + lv[2]) * loss_emo + lv[1] * loss_cou


def _reference(log_vars, pred_emo, pred_cou, emo, cou):
    lv = log_vars.astype(jnp.float32)
    pe = pred_emo.astype(jnp.float32)
    em = emo.astype(jnp.float32)
    pc = pred_cou.astype(jnp.float32)
    B = pe.shape[0]
    mse = jnp.mean((pe - em) ** 2)
    lse = jax.nn.logsumexp(pc, axis=-1)
    ce = jnp.mean(lse - pc[jnp.arange(B), cou])
    return lv[0] * mse + lv[1] * ce + lv[2] * mse


if __name__ == "__main__":
    # Deterministic parameter init matching nn.Parameter([0.33, 0.33, 0.33]).
    log_vars = jnp.array([0.33, 0.33, 0.33], dtype=jnp.float32)

    def run_case(seed, B, E, C, A, dtype, block_b):
        k = jax.random.split(jax.random.PRNGKey(seed), 6)
        pred_emo = jax.random.normal(k[0], (B, E), dtype=jnp.float32).astype(dtype)
        emo      = jax.random.normal(k[1], (B, E), dtype=jnp.float32).astype(dtype)
        pred_cou = jax.random.normal(k[2], (B, C), dtype=jnp.float32).astype(dtype)
        cou      = jax.random.randint(k[3], (B,), 0, C, dtype=jnp.int32)
        pred_age = jax.random.normal(k[4], (B, A), dtype=jnp.float32).astype(dtype)
        age      = jax.random.normal(k[5], (B, A), dtype=jnp.float32).astype(dtype)

        loss = ori_loss_func(log_vars, pred_emo, pred_cou, pred_age, emo, cou, age,
                             block_b=block_b)
        jax.block_until_ready(loss)
        ref = _reference(log_vars, pred_emo, pred_cou, emo, cou)
        assert jnp.allclose(loss, ref, rtol=1e-4, atol=1e-5), (B, dtype, loss, ref)

    # 1) Small single-block fast path (B <= TB): shapes implied by the module head.
    run_case(0, B=8,   E=4, C=8, A=1, dtype=jnp.float32,  block_b=16384)
    # 2) Multi-tile with ragged last tile (3 tiles of 96 rows; in-kernel masking).
    run_case(1, B=200, E=4, C=8, A=1, dtype=jnp.float32,  block_b=96)
    # 3) bf16 inputs, multi-tile, exact division (native-dtype DMA, in-kernel upcast).
    run_case(2, B=256, E=4, C=8, A=1, dtype=jnp.bfloat16, block_b=128)

    print("KERNEL_OK")
</pallas_src>

<mosaic_0001>
module attributes {stable_mosaic.version = 11 : i64} {
  func.func @kernel(%arg0: i32, %arg1: memref<8x4xf32, #tpu.memory_space<vmem>>, %arg2: memref<8x4xf32, #tpu.memory_space<vmem>>, %arg3: memref<8x8xf32, #tpu.memory_space<vmem>>, %arg4: memref<8x1xi32, #tpu.memory_space<vmem>>, %arg5: memref<1x1x1xf32, #tpu.memory_space<vmem>>, %arg6: memref<1x1x1xf32, #tpu.memory_space<vmem>>) attributes {dimension_semantics = [#tpu.dimension_semantics<parallel>], iteration_bounds = array<i64: 1>, scalar_prefetch = 0 : i64, scratch_operands = 0 : i64, tpu.core_type = #tpu.core_type<tc>, window_params = [{transform_indices = @transform_0, window_bounds = array<i64: 8, 4>}, {transform_indices = @transform_1, window_bounds = array<i64: 8, 4>}, {transform_indices = @transform_2, window_bounds = array<i64: 8, 8>}, {transform_indices = @transform_3, window_bounds = array<i64: 8, 1>}, {transform_indices = @transform_4, window_bounds = array<i64: 1, 1, 1>}, {transform_indices = @transform_5, window_bounds = array<i64: 1, 1, 1>}]} {
    %c0 = arith.constant 0 : index
    %c0_0 = arith.constant 0 : index
    %0 = vector.load %arg1[%c0, %c0_0] : memref<8x4xf32, #tpu.memory_space<vmem>>, vector<8x4xf32>
    %c0_1 = arith.constant 0 : index
    %c0_2 = arith.constant 0 : index
    %1 = vector.load %arg2[%c0_1, %c0_2] : memref<8x4xf32, #tpu.memory_space<vmem>>, vector<8x4xf32>
    %2 = arith.subf %0, %1 : vector<8x4xf32>
    %3 = arith.mulf %2, %2 : vector<8x4xf32>
    %4 = vector.shape_cast %3 : vector<8x4xf32> to vector<1x8x4xf32>
    %cst = arith.constant dense<0.000000e+00> : vector<1xf32>
    %5 = vector.multi_reduction <add>, %4, %cst [1, 2] : vector<1x8x4xf32> to vector<1xf32>
    %6 = vector.shape_cast %5 : vector<1xf32> to vector<1x1x1xf32>
    %7 = vector.extract %6[0, 0, 0] : f32 from vector<1x1x1xf32>
    %8 = vector.broadcast %7 : f32 to vector<1x1xf32>
    %9 = vector.shape_cast %8 : vector<1x1xf32> to vector<1x1x1xf32>
    %c0_3 = arith.constant 0 : index
    %c0_4 = arith.constant 0 : index
    %c0_5 = arith.constant 0 : index
    %10 = vector.load %arg5[%c0_3, %c0_4, %c0_5] : memref<1x1x1xf32, #tpu.memory_space<vmem>>, vector<1x1x1xf32>
    tpu.vector_store %arg5[%c0_3, %c0_4, %c0_5], %9 {strides = array<i32>} : memref<1x1x1xf32, #tpu.memory_space<vmem>>, vector<1x1x1xf32>,
    %c0_6 = arith.constant 0 : index
    %c0_7 = arith.constant 0 : index
    %11 = vector.load %arg3[%c0_6, %c0_7] : memref<8x8xf32, #tpu.memory_space<vmem>>, vector<8x8xf32>
    %cst_8 = arith.constant dense<0xFF800000> : vector<8xf32>
    %12 = vector.multi_reduction <maximumf>, %11, %cst_8 [1] : vector<8x8xf32> to vector<8xf32>
    %13 = vector.shape_cast %12 : vector<8xf32> to vector<8x1xf32>
    %14 = vector.broadcast %13 : vector<8x1xf32> to vector<8x8xf32>
    %15 = arith.subf %11, %14 : vector<8x8xf32>
    %16 = math.exp %15 : vector<8x8xf32>
    %cst_9 = arith.constant dense<0.000000e+00> : vector<8xf32>
    %17 = vector.multi_reduction <add>, %16, %cst_9 [1] : vector<8x8xf32> to vector<8xf32>
    %18 = vector.shape_cast %17 : vector<8xf32> to vector<8x1xf32>
    %19 = math.log %18 : vector<8x1xf32>
    %20 = arith.addf %19, %13 : vector<8x1xf32>
    %21 = tpu.iota {dimensions = array<i32: 1>} : vector<8x8xi32>
    %c0_10 = arith.constant 0 : index
    %c0_11 = arith.constant 0 : index
    %22 = vector.load %arg4[%c0_10, %c0_11] : memref<8x1xi32, #tpu.memory_space<vmem>>, vector<8x1xi32>
    %23 = vector.broadcast %22 : vector<8x1xi32> to vector<8x8xi32>
    %24 = arith.cmpi eq, %21, %23 : vector<8x8xi32>
    %cst_12 = arith.constant 0.000000e+00 : f32
    %25 = vector.broadcast %cst_12 : f32 to vector<8x8xf32>
    %26 = arith.select %24, %11, %25 : vector<8x8xi1>, vector<8x8xf32>
    %cst_13 = arith.constant dense<0.000000e+00> : vector<8xf32>
    %27 = vector.multi_reduction <add>, %26, %cst_13 [1] : vector<8x8xf32> to vector<8xf32>
    %28 = vector.shape_cast %27 : vector<8xf32> to vector<8x1xf32>
    %29 = arith.subf %20, %28 : vector<8x1xf32>
    %30 = vector.shape_cast %29 : vector<8x1xf32> to vector<1x8x1xf32>
    %cst_14 = arith.constant dense<0.000000e+00> : vector<1xf32>
    %31 = vector.multi_reduction <add>, %30, %cst_14 [1, 2] : vector<1x8x1xf32> to vector<1xf32>
    %32 = vector.shape_cast %31 : vector<1xf32> to vector<1x1x1xf32>
    %33 = vector.extract %32[0, 0, 0] : f32 from vector<1x1x1xf32>
    %34 = vector.broadcast %33 : f32 to vector<1x1xf32>
    %35 = vector.shape_cast %34 : vector<1x1xf32> to vector<1x1x1xf32>
    %c0_15 = arith.constant 0 : index
    %c0_16 = arith.constant 0 : index
    %c0_17 = arith.constant 0 : index
    %36 = vector.load %arg6[%c0_15, %c0_16, %c0_17] : memref<1x1x1xf32, #tpu.memory_space<vmem>>, vector<1x1x1xf32>
    tpu.vector_store %arg6[%c0_15, %c0_16, %c0_17], %35 {strides = array<i32>} : memref<1x1x1xf32, #tpu.memory_space<vmem>>, vector<1x1x1xf32>,
    return
  }
  func.func @transform_0(%arg0: i32) -> (i32, i32) {
    %c0_i32 = arith.constant 0 : i32
    %c0_i32_0 = arith.constant 0 : i32
    return %arg0, %c0_i32 : i32, i32
  }
  func.func @transform_1(%arg0: i32) -> (i32, i32) {
    %c0_i32 = arith.constant 0 : i32
    %c0_i32_0 = arith.constant 0 : i32
    return %arg0, %c0_i32 : i32, i32
  }
  func.func @transform_2(%arg0: i32) -> (i32, i32) {
    %c0_i32 = arith.constant 0 : i32
    %c0_i32_0 = arith.constant 0 : i32
    return %arg0, %c0_i32 : i32, i32
  }
  func.func @transform_3(%arg0: i32) -> (i32, i32) {
    %c0_i32 = arith.constant 0 : i32
    %c0_i32_0 = arith.constant 0 : i32
    return %arg0, %c0_i32 : i32, i32
  }
  func.func @transform_4(%arg0: i32) -> (i32, i32, i32) {
    %c0_i32 = arith.constant 0 : i32
    %c0_i32_0 = arith.constant 0 : i32
    %c0_i32_1 = arith.constant 0 : i32
    return %arg0, %c0_i32, %c0_i32_0 : i32, i32, i32
  }
  func.func @transform_5(%arg0: i32) -> (i32, i32, i32) {
    %c0_i32 = arith.constant 0 : i32
    %c0_i32_0 = arith.constant 0 : i32
    %c0_i32_1 = arith.constant 0 : i32
    return %arg0, %c0_i32, %c0_i32_0 : i32, i32, i32
  }
}

</mosaic_0001>

<llo_original>
// kernel: tpu_custom_call.1
$region0: #{tpu_custom_call.1}
  #allocation0 [shape = 'u32[]', space=smem, size = 0x4, offset = 0x4, fixed_abs, tag = 'smem constant byte address 0x4 - core index']
  #allocation1 [shape = 'u32[144,128]{1,0:T(1,128)}', space=vmem, size = 0x12000, scoped, tag = 'internal scratch']
  %s0 = inlined_call_operand.vmem [shape: f32[8,4], index: 0, kind: input, shape index: {}]
  %s1 = inlined_call_operand.vmem [shape: f32[8,4], index: 1, kind: input, shape index: {}]
  %s2 = inlined_call_operand.vmem [shape: f32[8,8], index: 2, kind: input, shape index: {}]
  %s3 = inlined_call_operand.vmem [shape: s32[8,1], index: 3, kind: input, shape index: {}]
  %s4 = inlined_call_operand.hbm [shape: f32[1,1,1], index: 4, kind: output, shape index: {0}]
  %s5 = inlined_call_operand.hbm [shape: f32[1,1,1], index: 5, kind: output, shape index: {1}]
  %6 = xla_tuple %s4, %s5
  %s7 = sld [smem:[#allocation0]]
  $region34: #{tpu_custom_call.1} parent=0
    _
  %s9 = ssub.s32 1, %s7
  %s10 = scalar_select 0, %s9, %s7
  $region1: #{tpu_custom_call.1} parent=0
    #allocation2 [shape = 'u8[512]{0}', space=vmem, size = 0x400, scoped, tag = 'output window, operand 0, single buffered']
    #allocation3 [shape = 's32[1]{0}', space=sflag, size = 0x4, scoped, tag = 'scoped memory for tpu_custom_call.1']
    #allocation4 [shape = 'u8[512]{0}', space=vmem, size = 0x400, scoped, tag = 'output window, operand 1, single buffered']
    #allocation5 [shape = 's32[1]{0}', space=sflag, size = 0x4, scoped, tag = 'scoped memory for tpu_custom_call.1']
    %11 = vsyncpa [#allocation3], 0
    %12 = vsyncpa [#allocation5], 0
    // Predicated region
    $region2: #{tpu_custom_call.1} parent=1 // pred_check
      _
    $region3: #{tpu_custom_call.1} parent=1 // pred_check_branch
      %14 = sbr.rel (0) target = $region5
    $region4: #{tpu_custom_call.1} parent=1 // pred_region
      _
    $region5: #{tpu_custom_call.1} parent=1 // pred_fallthru
      _
    // Predicated region
    $region6: #{tpu_custom_call.1} parent=1 // pred_check
      _
    $region7: #{tpu_custom_call.1} parent=1 // pred_check_branch
      %16 = sbr.rel (0) target = $region9
    $region8: #{tpu_custom_call.1} parent=1 // pred_region
      _
    $region9: #{tpu_custom_call.1} parent=1 // pred_fallthru
      _
    // Predicated region
    $region10: #{tpu_custom_call.1} parent=1 // pred_check
      _
    $region11: #{tpu_custom_call.1} parent=1 // pred_check_branch
      %18 = sbr.rel (0) target = $region13
    $region12: #{tpu_custom_call.1} parent=1 // pred_region
      _
    $region13: #{tpu_custom_call.1} parent=1 // pred_fallthru
      _
    // Predicated region
    $region14: #{tpu_custom_call.1} parent=1 // pred_check
      _
    $region15: #{tpu_custom_call.1} parent=1 // pred_check_branch
      %20 = sbr.rel (0) target = $region17
    $region16: #{tpu_custom_call.1} parent=1 // pred_region
      _
    $region17: #{tpu_custom_call.1} parent=1 // pred_fallthru
      _
    %v21 = vld [vmem:[%s0] sm:$0xff]
    %v22 = vld [vmem:[%s1] sm:$0xff]
    %v23 = vsub.f32 %v21, %v22
    %v24 = vmul.f32 %v23, %v23
    %vm25 = vcmask 31744
    %v26 = vsel %vm25, %v24, 0.0
    %27 = vadd.xlane.f32.xlu0 %v26
    %v28 = vpop.xlane.xlu0 %27
    %v29 = vrot.slane %v28, 4
    %v30 = vadd.f32 %v28, %v29
    %v31 = vrot.slane %v30, 2
    %v32 = vadd.f32 %v30, %v31
    %v33 = vrot.slane %v32, 1
    %v34 = vadd.f32 %v32, %v33
    %s35 = vtos %v34
    %v36 = vstv %s35
    %vm37 = vcmask 0
    %38 = vst.msk [vmem:[#allocation2] sm:$0x1] %vm37, %v36
    %v39 = vld [vmem:[%s2] sm:$0xff]
    %vm40 = vcmask 64512
    %v41 = vsel %vm40, %v39, -inf
    %42 = vmax.xlane.f32.xlu0 %v41
    %v43 = vpop.xlane.xlu0 %42
    %v44 = vsub.f32 %v39, %v43
    %v45 = vmul.f32 %v44, 1.442695
    %v46 = vpow.pop %v45
    %v47 = vsel %vm40, %v46, 0.0
    %48 = vadd.xlane.f32.xlu0 %v47
    %v49 = vpop.xlane.xlu0 %48
    %v50 = vlog2.pop %v49
    %v51 = vmul.f32 %v50, 0.6931472
    %v52 = vadd.f32 %v51, %v43
    %v53 = vlaneseq
    %v54 = vand.u32 %v53, 127
    %v55 = vld [vmem:[%s3] sm:$0xff]
    %56 = vset.pattern.permute.xlu0 0
    %57 = vperm.xlu0 %56, %v55
    %v58 = vpop.permute.xlu0 %57
    %vm59 = vcmp.eq.s32.totalorder %v54, %v58
    %v60 = vsel %vm59, %v39, 0.0
    %v61 = vsel %vm40, %v60, 0.0
    %62 = vadd.xlane.f32.xlu0 %v61
    %v63 = vpop.xlane.xlu0 %62
    %v64 = vsub.f32 %v52, %v63
    %vm65 = vcmask 7168
    %v66 = vsel %vm65, %v64, 0.0
    %67 = vadd.xlane.f32.xlu0 %v66
    %v68 = vpop.xlane.xlu0 %67
    %v69 = vrot.slane %v68, 4
    %v70 = vadd.f32 %v68, %v69
    %v71 = vrot.slane %v70, 2
    %v72 = vadd.f32 %v70, %v71
    %v73 = vrot.slane %v72, 1
    %v74 = vadd.f32 %v72, %v73
    %s75 = vtos %v74
    %v76 = vstv %s75
    %77 = vst.msk [vmem:[#allocation4] sm:$0x1] %vm37, %v76
    // Predicated region
    $region18: #{tpu_custom_call.1} parent=1 // pred_check
      _
    $region19: #{tpu_custom_call.1} parent=1 // pred_check_branch
      %79 = sbr.rel (0) target = $region21
    $region20: #{tpu_custom_call.1} parent=1 // pred_region
      %s81 = ssub.s32 16, 16
      %82 = vsyncadd [#allocation3], %s81
      %s84 = sshll.u32 [#allocation2], 4
      %s85 = int_to_ptr.vmem [resolvable:$true] %s84
      %87 = dma.vmem_to_hbm [thread:$0]  %s85, 16, %s4, [#allocation3]
    $region21: #{tpu_custom_call.1} parent=1 // pred_fallthru
      _
    // Predicated region
    $region22: #{tpu_custom_call.1} parent=1 // pred_check
      _
    $region23: #{tpu_custom_call.1} parent=1 // pred_check_branch
      %89 = sbr.rel (0) target = $region25
    $region24: #{tpu_custom_call.1} parent=1 // pred_region
      %s91 = ssub.s32 16, 16
      %92 = vsyncadd [#allocation5], %s91
      %s94 = sshll.u32 [#allocation4], 4
      %s95 = int_to_ptr.vmem [resolvable:$true] %s94
      %97 = dma.vmem_to_hbm [thread:$0]  %s95, 16, %s5, [#allocation5]
    $region25: #{tpu_custom_call.1} parent=1 // pred_fallthru
      _
    // Predicated region
    $region26: #{tpu_custom_call.1} parent=1 // pred_check
      _
    $region27: #{tpu_custom_call.1} parent=1 // pred_check_branch
      %99 = sbr.rel (0) target = $region29
    $region28: #{tpu_custom_call.1} parent=1 // pred_region
      %100 = dma.done [#allocation3], 16
    $region29: #{tpu_custom_call.1} parent=1 // pred_fallthru
      _
    // Predicated region
    $region30: #{tpu_custom_call.1} parent=1 // pred_check
      _
    $region31: #{tpu_custom_call.1} parent=1 // pred_check_branch
      %102 = sbr.rel (0) target = $region33
    $region32: #{tpu_custom_call.1} parent=1 // pred_region
      %103 = dma.done [#allocation5], 16
    $region33: #{tpu_custom_call.1} parent=1 // pred_fallthru
      _
    %104 = vsyncpa [#allocation3], 1
    %105 = vsyncpa [#allocation5], 1

</llo_original>
